<compile_context>
chip_gen: v5e
topology: v5e:2x2
jax: 0.10.0
libtpu: 0.0.40
codegen_flags: <defaults>
</compile_context>

<pallas_src>
import functools

import jax
import jax.numpy as jnp
import numpy as np
from jax.experimental import pallas as pl
from jax.experimental.pallas import tpu as pltpu

LANES = 128              # lane width of every slab (last dim)
N_PAD = 128              # padded node count (rows of A / x / hidden state)
G_PAD = 8                # padded graph count (sublane-aligned pool rows / output rows)
ONES_LANE = LANES - 1    # lane carrying the constant 1.0 used to fold biases


# ------------------------------- Pallas kernel ------------------------------ #
def _net_kernel(d_ref, w_ref, out_ref):
    # data slab: rows [A (128) | pool (8) | x (128)], 128 lanes each (8-row aligned views)
    a_m = d_ref[0:N_PAD, :]
    p_m = d_ref[N_PAD:N_PAD + G_PAD, :]
    h = d_ref[N_PAD + G_PAD:N_PAD + G_PAD + N_PAD, :]

    def gconv_relu(h, blk):
        # param slab block `blk`: [W_rel ; W_root (+bias in row 127, ones passthrough)]
        r = blk * 2 * LANES
        w_rel = w_ref[r:r + LANES, :]
        w_root = w_ref[r + LANES:r + 2 * LANES, :]
        agg = jnp.dot(a_m, h, preferred_element_type=jnp.float32)   # neighbor add-agg
        # bias lives in row ONES_LANE of w_root; h[:, ONES_LANE] == 1 for real node rows
        return jnp.maximum(
            jnp.dot(agg, w_rel, preferred_element_type=jnp.float32)
            + jnp.dot(h, w_root, preferred_element_type=jnp.float32),
            0.0)

    # conv1..conv3 (+relu); dropout(p=0.5) is identity in eval mode
    # TODO(synk): training-mode dropout would need pltpu.prng_seed / prng_random_bits.
    h = gconv_relu(h, 0)
    h = gconv_relu(h, 1)
    h = gconv_relu(h, 2)

    # global_add_pool -> [G_PAD, LANES]
    pooled = jnp.dot(p_m, h, preferred_element_type=jnp.float32)
    # pooling summed the ones-lane to |graph|; reset it to 1 so MLP bias rows apply once
    ones_lane = jax.lax.broadcasted_iota(jnp.int32, pooled.shape, 1) == ONES_LANE
    pooled = jnp.where(ones_lane, 1.0, pooled)

    # MLP head: relu(linear) -> (dropout identity) -> linear; biases folded via ones-lane
    w_mh = w_ref[6 * LANES:7 * LANES, :]
    w_mo = w_ref[7 * LANES:8 * LANES, :]
    hid = jnp.maximum(jnp.dot(pooled, w_mh, preferred_element_type=jnp.float32), 0.0)
    out_ref[...] = jnp.dot(hid, w_mo, preferred_element_type=jnp.float32)


# ------------------------------ packing / wrapper ---------------------------- #
def prepack_params(p):
    """Pack all weights + biases ONCE into a single lane-dense [8*128, 128] slab."""
    def blk(w, b=None, passthrough=False):
        assert w.shape[0] <= ONES_LANE and w.shape[1] <= LANES
        m = jnp.zeros((LANES, LANES), jnp.float32).at[:w.shape[0], :w.shape[1]].set(w)
        if b is not None:
            bb = jnp.reshape(b, (-1,))
            m = m.at[ONES_LANE, :bb.shape[0]].set(bb)      # bias row
        if passthrough:                                     # keep ones-lane alive
            m = m.at[ONES_LANE, ONES_LANE].set(1.0)
        return m

    return jnp.concatenate(
        [
            blk(p["w1r"]),                  blk(p["w1s"], p["b1"], True),
            blk(p["w2r"]),                  blk(p["w2s"], p["b2"], True),
            blk(p["w3r"]),                  blk(p["w3s"], p["b3"], True),
            blk(p["wmh"], p["bmh"], True),  blk(p["wmo"], p["bmo"], False),
        ],
        axis=0,
    )                                                       # [1024, 128]


@functools.partial(jax.jit, static_argnames=("out_channel",))
def net_forward(a, pool, x, w_slab, *, out_channel):
    """a: [N,N] dense add-aggregation matrix, pool: [G,N] one-hot pooling matrix,
    x: [N,Cin] node features, w_slab: prepacked params. Returns [G, out_channel]."""
    N = a.shape[0]
    G = pool.shape[0]
    Cin = x.shape[1]
    assert N <= N_PAD and G <= G_PAD and Cin <= ONES_LANE and out_channel <= LANES

    # per-call data slab (pads/updates fuse under jit): [A | pool | x], 128 lanes
    d = jnp.zeros((N_PAD + G_PAD + N_PAD, LANES), jnp.float32)
    d = d.at[:N, :N].set(a)
    d = d.at[N_PAD:N_PAD + G, :N].set(pool)
    d = d.at[N_PAD + G_PAD:N_PAD + G_PAD + N, :Cin].set(x)
    d = d.at[N_PAD + G_PAD:N_PAD + G_PAD + N, ONES_LANE].set(1.0)   # ones-lane for biases

    flops = 9 * 2 * N_PAD * LANES * LANES + 3 * 2 * G_PAD * LANES * LANES
    bytes_accessed = 4 * (d.size + w_slab.size + G_PAD * LANES)

    vmem = pltpu.MemorySpace.VMEM
    out_padded = pl.pallas_call(
        _net_kernel,
        out_shape=jax.ShapeDtypeStruct((G_PAD, LANES), jnp.float32),
        in_specs=[pl.BlockSpec(memory_space=vmem)] * 2,
        out_specs=pl.BlockSpec(memory_space=vmem),
        cost_estimate=pl.CostEstimate(
            flops=flops, transcendentals=0, bytes_accessed=bytes_accessed),
    )(d, w_slab)
    # TODO(synk): when running many graphs per step, batch them and add a leading
    # "parallel" grid axis (dimension_semantics) so v7x's two TensorCores are both used.
    return out_padded[:G, :out_channel]


# --------------------------------- glue / setup ------------------------------ #
def make_params(key, in_channel, hidden, out_channel):
    ks = jax.random.split(key, 16)

    def w(k, shape, fan_in):
        lim = 1.0 / np.sqrt(fan_in)
        return jax.random.uniform(k, shape, jnp.float32, -lim, lim)

    return {
        # GraphConv 1 (in -> hidden): lin_rel (with bias), lin_root (no bias)
        "w1r": w(ks[0], (in_channel, hidden), in_channel),
        "w1s": w(ks[1], (in_channel, hidden), in_channel),
        "b1":  w(ks[2], (1, hidden), in_channel),
        # GraphConv 2 (hidden -> hidden)
        "w2r": w(ks[3], (hidden, hidden), hidden),
        "w2s": w(ks[4], (hidden, hidden), hidden),
        "b2":  w(ks[5], (1, hidden), hidden),
        # GraphConv 3 (hidden -> hidden)
        "w3r": w(ks[6], (hidden, hidden), hidden),
        "w3s": w(ks[7], (hidden, hidden), hidden),
        "b3":  w(ks[8], (1, hidden), hidden),
        # mlp_hidden (hidden -> hidden)
        "wmh": w(ks[9], (hidden, hidden), hidden),
        "bmh": w(ks[10], (1, hidden), hidden),
        # mlp_output (hidden -> out)
        "wmo": w(ks[11], (hidden, out_channel), hidden),
        "bmo": w(ks[12], (1, out_channel), hidden),
    }


def dense_adjacency(edge_index, num_nodes):
    src, dst = edge_index[0], edge_index[1]
    a = jnp.zeros((num_nodes, num_nodes), jnp.float32)
    return a.at[dst, src].add(1.0)  # row i sums features of i's in-neighbors (aggr='add')


def pooling_matrix(batch, num_graphs):
    return (batch[None, :] == jnp.arange(num_graphs)[:, None]).astype(jnp.float32)


def reference_forward(a, pool, x, p):
    def gc(h, wr, ws, b):
        return (a @ h) @ wr + b + h @ ws

    h = jax.nn.relu(gc(x, p["w1r"], p["w1s"], p["b1"]))
    h = jax.nn.relu(gc(h, p["w2r"], p["w2s"], p["b2"]))
    h = jax.nn.relu(gc(h, p["w3r"], p["w3s"], p["b3"]))
    pooled = pool @ h
    hid = jax.nn.relu(pooled @ p["wmh"] + p["bmh"])
    return hid @ p["wmo"] + p["bmo"]


if __name__ == "__main__":
    key = jax.random.PRNGKey(0)
    k_param, k_x, k_edge = jax.random.split(key, 3)

    N_NODES, N_EDGES, N_GRAPHS = 16, 40, 2
    IN_CH, HIDDEN, OUT_CH = 8, 32, 4

    params = make_params(k_param, IN_CH, HIDDEN, OUT_CH)
    w_slab = prepack_params(params)          # packed once at init, reused per call

    x = jax.random.normal(k_x, (N_NODES, IN_CH), jnp.float32)
    edge_index = jax.random.randint(k_edge, (2, N_EDGES), 0, N_NODES, jnp.int32)
    batch = jnp.concatenate([
        jnp.zeros((N_NODES // 2,), jnp.int32),
        jnp.ones((N_NODES - N_NODES // 2,), jnp.int32),
    ])

    a = dense_adjacency(edge_index, N_NODES)
    pool = pooling_matrix(batch, N_GRAPHS)

    out = net_forward(a, pool, x, w_slab, out_channel=OUT_CH)
    out = jax.block_until_ready(out)

    ref = reference_forward(a, pool, x, params)
    np.testing.assert_allclose(np.asarray(out), np.asarray(ref), rtol=1e-5, atol=1e-5)

    print("KERNEL_OK")
</pallas_src>

<mosaic_0001>
module attributes {stable_mosaic.version = 11 : i64} {
  func.func @_net_kernel(%arg0: memref<264x128xf32, #tpu.memory_space<vmem>>, %arg1: memref<1024x128xf32, #tpu.memory_space<vmem>>, %arg2: memref<8x128xf32, #tpu.memory_space<vmem>>) attributes {dimension_semantics = [], scalar_prefetch = 0 : i64, scratch_operands = 0 : i64, tpu.core_type = #tpu.core_type<tc>} {
    %c0 = arith.constant 0 : index
    %c0_0 = arith.constant 0 : index
    %0 = vector.load %arg0[%c0, %c0_0] : memref<264x128xf32, #tpu.memory_space<vmem>>, vector<128x128xf32>
    %c128 = arith.constant 128 : index
    %c0_1 = arith.constant 0 : index
    %1 = vector.load %arg0[%c128, %c0_1] : memref<264x128xf32, #tpu.memory_space<vmem>>, vector<8x128xf32>
    %c136 = arith.constant 136 : index
    %c0_2 = arith.constant 0 : index
    %2 = vector.load %arg0[%c136, %c0_2] : memref<264x128xf32, #tpu.memory_space<vmem>>, vector<128x128xf32>
    %c0_3 = arith.constant 0 : index
    %c0_4 = arith.constant 0 : index
    %3 = vector.load %arg1[%c0_3, %c0_4] : memref<1024x128xf32, #tpu.memory_space<vmem>>, vector<128x128xf32>
    %c128_5 = arith.constant 128 : index
    %c0_6 = arith.constant 0 : index
    %4 = vector.load %arg1[%c128_5, %c0_6] : memref<1024x128xf32, #tpu.memory_space<vmem>>, vector<128x128xf32>
    %cst = arith.constant dense<0.000000e+00> : vector<128x128xf32>
    %5 = tpu.matmul %0, %2, %cst {dimension_numbers = #tpu.dot_dimension_numbers<[1], [0], [0], [1], [0, 0, 1, 1], [], []>} : vector<128x128xf32>, vector<128x128xf32>, vector<128x128xf32> -> vector<128x128xf32>
    %cst_7 = arith.constant dense<0.000000e+00> : vector<128x128xf32>
    %6 = tpu.matmul %5, %3, %cst_7 {dimension_numbers = #tpu.dot_dimension_numbers<[1], [0], [0], [1], [0, 0, 1, 1], [], []>} : vector<128x128xf32>, vector<128x128xf32>, vector<128x128xf32> -> vector<128x128xf32>
    %cst_8 = arith.constant dense<0.000000e+00> : vector<128x128xf32>
    %7 = tpu.matmul %2, %4, %cst_8 {dimension_numbers = #tpu.dot_dimension_numbers<[1], [0], [0], [1], [0, 0, 1, 1], [], []>} : vector<128x128xf32>, vector<128x128xf32>, vector<128x128xf32> -> vector<128x128xf32>
    %8 = arith.addf %6, %7 : vector<128x128xf32>
    %cst_9 = arith.constant 0.000000e+00 : f32
    %9 = vector.broadcast %cst_9 : f32 to vector<128x128xf32>
    %10 = arith.maximumf %8, %9 : vector<128x128xf32>
    %c256 = arith.constant 256 : index
    %c0_10 = arith.constant 0 : index
    %11 = vector.load %arg1[%c256, %c0_10] : memref<1024x128xf32, #tpu.memory_space<vmem>>, vector<128x128xf32>
    %c384 = arith.constant 384 : index
    %c0_11 = arith.constant 0 : index
    %12 = vector.load %arg1[%c384, %c0_11] : memref<1024x128xf32, #tpu.memory_space<vmem>>, vector<128x128xf32>
    %cst_12 = arith.constant dense<0.000000e+00> : vector<128x128xf32>
    %13 = tpu.matmul %0, %10, %cst_12 {dimension_numbers = #tpu.dot_dimension_numbers<[1], [0], [0], [1], [0, 0, 1, 1], [], []>} : vector<128x128xf32>, vector<128x128xf32>, vector<128x128xf32> -> vector<128x128xf32>
    %cst_13 = arith.constant dense<0.000000e+00> : vector<128x128xf32>
    %14 = tpu.matmul %13, %11, %cst_13 {dimension_numbers = #tpu.dot_dimension_numbers<[1], [0], [0], [1], [0, 0, 1, 1], [], []>} : vector<128x128xf32>, vector<128x128xf32>, vector<128x128xf32> -> vector<128x128xf32>
    %cst_14 = arith.constant dense<0.000000e+00> : vector<128x128xf32>
    %15 = tpu.matmul %10, %12, %cst_14 {dimension_numbers = #tpu.dot_dimension_numbers<[1], [0], [0], [1], [0, 0, 1, 1], [], []>} : vector<128x128xf32>, vector<128x128xf32>, vector<128x128xf32> -> vector<128x128xf32>
    %16 = arith.addf %14, %15 : vector<128x128xf32>
    %cst_15 = arith.constant 0.000000e+00 : f32
    %17 = vector.broadcast %cst_15 : f32 to vector<128x128xf32>
    %18 = arith.maximumf %16, %17 : vector<128x128xf32>
    %c512 = arith.constant 512 : index
    %c0_16 = arith.constant 0 : index
    %19 = vector.load %arg1[%c512, %c0_16] : memref<1024x128xf32, #tpu.memory_space<vmem>>, vector<128x128xf32>
    %c640 = arith.constant 640 : index
    %c0_17 = arith.constant 0 : index
    %20 = vector.load %arg1[%c640, %c0_17] : memref<1024x128xf32, #tpu.memory_space<vmem>>, vector<128x128xf32>
    %cst_18 = arith.constant dense<0.000000e+00> : vector<128x128xf32>
    %21 = tpu.matmul %0, %18, %cst_18 {dimension_numbers = #tpu.dot_dimension_numbers<[1], [0], [0], [1], [0, 0, 1, 1], [], []>} : vector<128x128xf32>, vector<128x128xf32>, vector<128x128xf32> -> vector<128x128xf32>
    %cst_19 = arith.constant dense<0.000000e+00> : vector<128x128xf32>
    %22 = tpu.matmul %21, %19, %cst_19 {dimension_numbers = #tpu.dot_dimension_numbers<[1], [0], [0], [1], [0, 0, 1, 1], [], []>} : vector<128x128xf32>, vector<128x128xf32>, vector<128x128xf32> -> vector<128x128xf32>
    %cst_20 = arith.constant dense<0.000000e+00> : vector<128x128xf32>
    %23 = tpu.matmul %18, %20, %cst_20 {dimension_numbers = #tpu.dot_dimension_numbers<[1], [0], [0], [1], [0, 0, 1, 1], [], []>} : vector<128x128xf32>, vector<128x128xf32>, vector<128x128xf32> -> vector<128x128xf32>
    %24 = arith.addf %22, %23 : vector<128x128xf32>
    %cst_21 = arith.constant 0.000000e+00 : f32
    %25 = vector.broadcast %cst_21 : f32 to vector<128x128xf32>
    %26 = arith.maximumf %24, %25 : vector<128x128xf32>
    %cst_22 = arith.constant dense<0.000000e+00> : vector<8x128xf32>
    %27 = tpu.matmul %1, %26, %cst_22 {dimension_numbers = #tpu.dot_dimension_numbers<[1], [0], [0], [1], [0, 0, 1, 1], [], []>} : vector<8x128xf32>, vector<128x128xf32>, vector<8x128xf32> -> vector<8x128xf32>
    %28 = tpu.iota {dimensions = array<i32: 1>} : vector<8x128xi32>
    %c127_i32 = arith.constant 127 : i32
    %29 = vector.broadcast %c127_i32 : i32 to vector<8x128xi32>
    %30 = arith.cmpi eq, %28, %29 : vector<8x128xi32>
    %cst_23 = arith.constant 1.000000e+00 : f32
    %31 = vector.broadcast %cst_23 : f32 to vector<8x128xf32>
    %32 = arith.select %30, %31, %27 : vector<8x128xi1>, vector<8x128xf32>
    %c768 = arith.constant 768 : index
    %c0_24 = arith.constant 0 : index
    %33 = vector.load %arg1[%c768, %c0_24] : memref<1024x128xf32, #tpu.memory_space<vmem>>, vector<128x128xf32>
    %c896 = arith.constant 896 : index
    %c0_25 = arith.constant 0 : index
    %34 = vector.load %arg1[%c896, %c0_25] : memref<1024x128xf32, #tpu.memory_space<vmem>>, vector<128x128xf32>
    %cst_26 = arith.constant dense<0.000000e+00> : vector<8x128xf32>
    %35 = tpu.matmul %32, %33, %cst_26 {dimension_numbers = #tpu.dot_dimension_numbers<[1], [0], [0], [1], [0, 0, 1, 1], [], []>} : vector<8x128xf32>, vector<128x128xf32>, vector<8x128xf32> -> vector<8x128xf32>
    %cst_27 = arith.constant 0.000000e+00 : f32
    %36 = vector.broadcast %cst_27 : f32 to vector<8x128xf32>
    %37 = arith.maximumf %35, %36 : vector<8x128xf32>
    %cst_28 = arith.constant dense<0.000000e+00> : vector<8x128xf32>
    %38 = tpu.matmul %37, %34, %cst_28 {dimension_numbers = #tpu.dot_dimension_numbers<[1], [0], [0], [1], [0, 0, 1, 1], [], []>} : vector<8x128xf32>, vector<128x128xf32>, vector<8x128xf32> -> vector<8x128xf32>
    %c0_29 = arith.constant 0 : index
    %c0_30 = arith.constant 0 : index
    %39 = vector.load %arg2[%c0_29, %c0_30] : memref<8x128xf32, #tpu.memory_space<vmem>>, vector<8x128xf32>
    tpu.vector_store %arg2[%c0_29, %c0_30], %38 {strides = array<i32>} : memref<8x128xf32, #tpu.memory_space<vmem>>, vector<8x128xf32>,
    return
  }
}

</mosaic_0001>

<llo_original>
// kernel: net_forward.1
$region0: #{net_forward.1}
  #allocation0 [shape = 'u32[]', space=smem, size = 0x4, offset = 0x4, fixed_abs, tag = 'smem constant byte address 0x4 - core index']
  #allocation1 [shape = 'u32[72,128]{1,0:T(1,128)}', space=vmem, size = 0x9000, scoped, tag = 'internal scratch']
  %s0 = inlined_call_operand.vmem [shape: f32[264,128], index: 0, kind: input, shape index: {}]
  %s1 = inlined_call_operand.hbm [shape: f32[1024,128], index: 1, kind: input, shape index: {}]
  %s2 = inlined_call_operand.vmem [shape: f32[8,128], index: 2, kind: output, shape index: {}]
  %s3 = sld [smem:[#allocation0]]
  $region22: #{net_forward.1} parent=0
    _
  %s5 = ssub.s32 1, %s3
  %s6 = scalar_select 0, %s5, %s3
  $region1: #{net_forward.1} parent=0
    #allocation2 [shape = 'u8[524288]{0}', space=vmem, size = 0x80000, scoped, tag = 'input window, operand 1, single buffered']
    #allocation3 [shape = 's32[1]{0}', space=sflag, size = 0x4, scoped, tag = 'scoped memory for net_forward.1']
    %7 = vsyncpa [#allocation3], 0
    // Predicated region
    $region2: #{net_forward.1} parent=1 // pred_check
      _
    $region3: #{net_forward.1} parent=1 // pred_check_branch
      %9 = sbr.rel (0) target = $region5
    $region4: #{net_forward.1} parent=1 // pred_region
      _
    $region5: #{net_forward.1} parent=1 // pred_fallthru
      _
    // Predicated region
    $region6: #{net_forward.1} parent=1 // pred_check
      _
    $region7: #{net_forward.1} parent=1 // pred_check_branch
      %11 = sbr.rel (0) target = $region9
    $region8: #{net_forward.1} parent=1 // pred_region
      %13 = vsyncadd [#allocation3], 0
      %s14 = sshll.u32 %s1, 4
      %s15 = int_to_ptr.hbm [resolvable:$true] %s14
      %s16 = sshll.u32 [#allocation2], 4
      %s17 = int_to_ptr.vmem [resolvable:$true] %s16
      %22 = dma.hbm_to_vmem [thread:$0]  %s15, 16384, %s17, [#allocation3], 128, 128, 8
    $region9: #{net_forward.1} parent=1 // pred_fallthru
      _
    // Predicated region
    $region10: #{net_forward.1} parent=1 // pred_check
      _
    $region11: #{net_forward.1} parent=1 // pred_check_branch
      %24 = sbr.rel (0) target = $region13
    $region12: #{net_forward.1} parent=1 // pred_region
      %26 = dma.done [#allocation3], 16384
    $region13: #{net_forward.1} parent=1 // pred_fallthru
      _
    %v27 = vld [vmem:[%s0] sm:$0xff]
    %v28 = vld [vmem:[%s0 + $0x8] sm:$0xff]
    %v29 = vld [vmem:[%s0 + $0x10] sm:$0xff]
    %v30 = vld [vmem:[%s0 + $0x18] sm:$0xff]
    %v31 = vld [vmem:[%s0 + $0x20] sm:$0xff]
    %v32 = vld [vmem:[%s0 + $0x28] sm:$0xff]
    %v33 = vld [vmem:[%s0 + $0x30] sm:$0xff]
    %v34 = vld [vmem:[%s0 + $0x38] sm:$0xff]
    %v35 = vld [vmem:[%s0 + $0x40] sm:$0xff]
    %v36 = vld [vmem:[%s0 + $0x48] sm:$0xff]
    %v37 = vld [vmem:[%s0 + $0x50] sm:$0xff]
    %v38 = vld [vmem:[%s0 + $0x58] sm:$0xff]
    %v39 = vld [vmem:[%s0 + $0x60] sm:$0xff]
    %v40 = vld [vmem:[%s0 + $0x68] sm:$0xff]
    %v41 = vld [vmem:[%s0 + $0x70] sm:$0xff]
    %v42 = vld [vmem:[%s0 + $0x78] sm:$0xff]
    %v43 = vld [vmem:[%s0 + $0x80] sm:$0xff]
    %v44 = vld [vmem:[%s0 + $0x88] sm:$0xff]
    %v45 = vld [vmem:[%s0 + $0x90] sm:$0xff]
    %v46 = vld [vmem:[%s0 + $0x98] sm:$0xff]
    %v47 = vld [vmem:[%s0 + $0xa0] sm:$0xff]
    %v48 = vld [vmem:[%s0 + $0xa8] sm:$0xff]
    %v49 = vld [vmem:[%s0 + $0xb0] sm:$0xff]
    %v50 = vld [vmem:[%s0 + $0xb8] sm:$0xff]
    %v51 = vld [vmem:[%s0 + $0xc0] sm:$0xff]
    %v52 = vld [vmem:[%s0 + $0xc8] sm:$0xff]
    %v53 = vld [vmem:[%s0 + $0xd0] sm:$0xff]
    %v54 = vld [vmem:[%s0 + $0xd8] sm:$0xff]
    %v55 = vld [vmem:[%s0 + $0xe0] sm:$0xff]
    %v56 = vld [vmem:[%s0 + $0xe8] sm:$0xff]
    %v57 = vld [vmem:[%s0 + $0xf0] sm:$0xff]
    %v58 = vld [vmem:[%s0 + $0xf8] sm:$0xff]
    %v59 = vld [vmem:[%s0 + $0x100] sm:$0xff]
    %v60 = vld [vmem:[#allocation2] sm:$0xff]
    %v61 = vld [vmem:[#allocation2 + $0x8] sm:$0xff]
    %v62 = vld [vmem:[#allocation2 + $0x10] sm:$0xff]
    %v63 = vld [vmem:[#allocation2 + $0x18] sm:$0xff]
    %v64 = vld [vmem:[#allocation2 + $0x20] sm:$0xff]
    %v65 = vld [vmem:[#allocation2 + $0x28] sm:$0xff]
    %v66 = vld [vmem:[#allocation2 + $0x30] sm:$0xff]
    %v67 = vld [vmem:[#allocation2 + $0x38] sm:$0xff]
    %v68 = vld [vmem:[#allocation2 + $0x40] sm:$0xff]
    %v69 = vld [vmem:[#allocation2 + $0x48] sm:$0xff]
    %v70 = vld [vmem:[#allocation2 + $0x50] sm:$0xff]
    %v71 = vld [vmem:[#allocation2 + $0x58] sm:$0xff]
    %v72 = vld [vmem:[#allocation2 + $0x60] sm:$0xff]
    %v73 = vld [vmem:[#allocation2 + $0x68] sm:$0xff]
    %v74 = vld [vmem:[#allocation2 + $0x70] sm:$0xff]
    %v75 = vld [vmem:[#allocation2 + $0x78] sm:$0xff]
    %v76 = vld [vmem:[#allocation2 + $0x80] sm:$0xff]
    %v77 = vld [vmem:[#allocation2 + $0x88] sm:$0xff]
    %v78 = vld [vmem:[#allocation2 + $0x90] sm:$0xff]
    %v79 = vld [vmem:[#allocation2 + $0x98] sm:$0xff]
    %v80 = vld [vmem:[#allocation2 + $0xa0] sm:$0xff]
    %v81 = vld [vmem:[#allocation2 + $0xa8] sm:$0xff]
    %v82 = vld [vmem:[#allocation2 + $0xb0] sm:$0xff]
    %v83 = vld [vmem:[#allocation2 + $0xb8] sm:$0xff]
    %v84 = vld [vmem:[#allocation2 + $0xc0] sm:$0xff]
    %v85 = vld [vmem:[#allocation2 + $0xc8] sm:$0xff]
    %v86 = vld [vmem:[#allocation2 + $0xd0] sm:$0xff]
    %v87 = vld [vmem:[#allocation2 + $0xd8] sm:$0xff]
    %v88 = vld [vmem:[#allocation2 + $0xe0] sm:$0xff]
    %v89 = vld [vmem:[#allocation2 + $0xe8] sm:$0xff]
    %v90 = vld [vmem:[#allocation2 + $0xf0] sm:$0xff]
    %v91 = vld [vmem:[#allocation2 + $0xf8] sm:$0xff]
    %92 = vmatpush.msra.mxu0 %v59
    %93 = vmatpush.msra.mxu0 %v58
    %94 = vmatpush.msra.mxu0 %v57
    %95 = vmatpush.msra.mxu0 %v56
    %96 = vmatpush.msra.mxu0 %v55
    %97 = vmatpush.msra.mxu0 %v54
    %98 = vmatpush.msra.mxu0 %v53
    %99 = vmatpush.msra.mxu0 %v52
    %100 = vmatpush.msra.mxu0 %v51
    %101 = vmatpush.msra.mxu0 %v50
    %102 = vmatpush.msra.mxu0 %v49
    %103 = vmatpush.msra.mxu0 %v48
    %104 = vmatpush.msra.mxu0 %v47
    %105 = vmatpush.msra.mxu0 %v46
    %106 = vmatpush.msra.mxu0 %v45
    %107 = vmatpush.msra.mxu0 %v44
    %108 = vmatmul.f32.gmra.mxu0 %v27
    %v109 = vpop.f32.mrf.mxu0
    %v110 = vadd.f32 0.0, %v109
    %111 = vmatmul.f32.gmra.mxu0 %v28
    %v112 = vpop.f32.mrf.mxu0
    %v113 = vadd.f32 0.0, %v112
    %114 = vmatmul.f32.gmra.mxu0 %v29
    %v115 = vpop.f32.mrf.mxu0
    %v116 = vadd.f32 0.0, %v115
    %117 = vmatmul.f32.gmra.mxu0 %v30
    %v118 = vpop.f32.mrf.mxu0
    %v119 = vadd.f32 0.0, %v118
    %120 = vmatmul.f32.gmra.mxu0 %v31
    %v121 = vpop.f32.mrf.mxu0
    %v122 = vadd.f32 0.0, %v121
    %123 = vmatmul.f32.gmra.mxu0 %v32
    %v124 = vpop.f32.mrf.mxu0
    %v125 = vadd.f32 0.0, %v124
    %126 = vmatmul.f32.gmra.mxu0 %v33
    %v127 = vpop.f32.mrf.mxu0
    %v128 = vadd.f32 0.0, %v127
    %129 = vmatmul.f32.gmra.mxu0 %v34
    %v130 = vpop.f32.mrf.mxu0
    %v131 = vadd.f32 0.0, %v130
    %132 = vmatmul.f32.gmra.mxu0 %v35
    %v133 = vpop.f32.mrf.mxu0
    %v134 = vadd.f32 0.0, %v133
    %135 = vmatmul.f32.gmra.mxu0 %v36
    %v136 = vpop.f32.mrf.mxu0
    %v137 = vadd.f32 0.0, %v136
    %138 = vmatmul.f32.gmra.mxu0 %v37
    %v139 = vpop.f32.mrf.mxu0
    %v140 = vadd.f32 0.0, %v139
    %141 = vmatmul.f32.gmra.mxu0 %v38
    %v142 = vpop.f32.mrf.mxu0
    %v143 = vadd.f32 0.0, %v142
    %144 = vmatmul.f32.gmra.mxu0 %v39
    %v145 = vpop.f32.mrf.mxu0
    %v146 = vadd.f32 0.0, %v145
    %147 = vmatmul.f32.gmra.mxu0 %v40
    %v148 = vpop.f32.mrf.mxu0
    %v149 = vadd.f32 0.0, %v148
    %150 = vmatmul.f32.gmra.mxu0 %v41
    %v151 = vpop.f32.mrf.mxu0
    %v152 = vadd.f32 0.0, %v151
    %153 = vmatmul.f32.gmra.mxu0 %v42
    %v154 = vpop.f32.mrf.mxu0
    %v155 = vadd.f32 0.0, %v154
    %156 = vdwg.mxu0
    %157 = vmatpush.msra.mxu0 %v91
    %158 = vmatpush.msra.mxu0 %v90
    %159 = vmatpush.msra.mxu0 %v89
    %160 = vmatpush.msra.mxu0 %v88
    %161 = vmatpush.msra.mxu0 %v87
    %162 = vmatpush.msra.mxu0 %v86
    %163 = vmatpush.msra.mxu0 %v85
    %164 = vmatpush.msra.mxu0 %v84
    %165 = vmatpush.msra.mxu0 %v83
    %166 = vmatpush.msra.mxu0 %v82
    %167 = vmatpush.msra.mxu0 %v81
    %168 = vmatpush.msra.mxu0 %v80
    %169 = vmatpush.msra.mxu0 %v79
    %170 = vmatpush.msra.mxu0 %v78
    %171 = vmatpush.msra.mxu0 %v77
    %172 = vmatpush.msra.mxu0 %v76
    %173 = vmatmul.f32.gmra.mxu0 %v44
    %v174 = vpop.f32.mrf.mxu0
    %v175 = vadd.f32 0.0, %v174
    %176 = vmatmul.f32.gmra.mxu0 %v45
    %v177 = vpop.f32.mrf.mxu0
    %v178 = vadd.f32 0.0, %v177
    %179 = vmatmul.f32.gmra.mxu0 %v46
    %v180 = vpop.f32.mrf.mxu0
    %v181 = vadd.f32 0.0, %v180
    %182 = vmatmul.f32.gmra.mxu0 %v47
    %v183 = vpop.f32.mrf.mxu0
    %v184 = vadd.f32 0.0, %v183
    %185 = vmatmul.f32.gmra.mxu0 %v48
    %v186 = vpop.f32.mrf.mxu0
    %v187 = vadd.f32 0.0, %v186
    %188 = vmatmul.f32.gmra.mxu0 %v49
    %v189 = vpop.f32.mrf.mxu0
    %v190 = vadd.f32 0.0, %v189
    %191 = vmatmul.f32.gmra.mxu0 %v50
    %v192 = vpop.f32.mrf.mxu0
    %v193 = vadd.f32 0.0, %v192
    %194 = vmatmul.f32.gmra.mxu0 %v51
    %v195 = vpop.f32.mrf.mxu0
    %v196 = vadd.f32 0.0, %v195
    %197 = vmatmul.f32.gmra.mxu0 %v52
    %v198 = vpop.f32.mrf.mxu0
    %v199 = vadd.f32 0.0, %v198
    %200 = vmatmul.f32.gmra.mxu0 %v53
    %v201 = vpop.f32.mrf.mxu0
    %v202 = vadd.f32 0.0, %v201
    %203 = vmatmul.f32.gmra.mxu0 %v54
    %v204 = vpop.f32.mrf.mxu0
    %v205 = vadd.f32 0.0, %v204
    %206 = vmatmul.f32.gmra.mxu0 %v55
    %v207 = vpop.f32.mrf.mxu0
    %v208 = vadd.f32 0.0, %v207
    %209 = vmatmul.f32.gmra.mxu0 %v56
    %v210 = vpop.f32.mrf.mxu0
    %v211 = vadd.f32 0.0, %v210
    %212 = vmatmul.f32.gmra.mxu0 %v57
    %v213 = vpop.f32.mrf.mxu0
    %v214 = vadd.f32 0.0, %v213
    %215 = vmatmul.f32.gmra.mxu0 %v58
    %v216 = vpop.f32.mrf.mxu0
    %v217 = vadd.f32 0.0, %v216
    %218 = vmatmul.f32.gmra.mxu0 %v59
    %v219 = vpop.f32.mrf.mxu0
    %v220 = vadd.f32 0.0, %v219
    %221 = vdwg.mxu0
    %222 = vmatpush.msra.mxu0 %v75
    %223 = vmatpush.msra.mxu0 %v74
    %224 = vmatpush.msra.mxu0 %v73
    %225 = vmatpush.msra.mxu0 %v72
    %226 = vmatpush.msra.mxu0 %v71
    %227 = vmatpush.msra.mxu0 %v70
    %228 = vmatpush.msra.mxu0 %v69
    %229 = vmatpush.msra.mxu0 %v68
    %230 = vmatpush.msra.mxu0 %v67
    %231 = vmatpush.msra.mxu0 %v66
    %232 = vmatpush.msra.mxu0 %v65
    %233 = vmatpush.msra.mxu0 %v64
    %234 = vmatpush.msra.mxu0 %v63
    %235 = vmatpush.msra.mxu0 %v62
    %236 = vmatpush.msra.mxu0 %v61
    %237 = vmatpush.msra.mxu0 %v60
    %238 = vmatmul.f32.gmra.mxu0 %v110
    %v239 = vpop.f32.mrf.mxu0
    %v240 = vadd.f32 %v175, %v239
    %241 = vmatmul.f32.gmra.mxu0 %v113
    %v242 = vpop.f32.mrf.mxu0
    %v243 = vadd.f32 %v178, %v242
    %244 = vmatmul.f32.gmra.mxu0 %v116
    %v245 = vpop.f32.mrf.mxu0
    %v246 = vadd.f32 %v181, %v245
    %247 = vmatmul.f32.gmra.mxu0 %v119
    %v248 = vpop.f32.mrf.mxu0
    %v249 = vadd.f32 %v184, %v248
    %250 = vmatmul.f32.gmra.mxu0 %v122
    %v251 = vpop.f32.mrf.mxu0
    %v252 = vadd.f32 %v187, %v251
    %253 = vmatmul.f32.gmra.mxu0 %v125
    %v254 = vpop.f32.mrf.mxu0
    %v255 = vadd.f32 %v190, %v254
    %256 = vmatmul.f32.gmra.mxu0 %v128
    %v257 = vpop.f32.mrf.mxu0
    %v258 = vadd.f32 %v193, %v257
    %259 = vmatmul.f32.gmra.mxu0 %v131
    %v260 = vpop.f32.mrf.mxu0
    %v261 = vadd.f32 %v196, %v260
    %262 = vmatmul.f32.gmra.mxu0 %v134
    %v263 = vpop.f32.mrf.mxu0
    %v264 = vadd.f32 %v199, %v263
    %265 = vmatmul.f32.gmra.mxu0 %v137
    %v266 = vpop.f32.mrf.mxu0
    %v267 = vadd.f32 %v202, %v266
    %268 = vmatmul.f32.gmra.mxu0 %v140
    %v269 = vpop.f32.mrf.mxu0
    %v270 = vadd.f32 %v205, %v269
    %271 = vmatmul.f32.gmra.mxu0 %v143
    %v272 = vpop.f32.mrf.mxu0
    %v273 = vadd.f32 %v208, %v272
    %274 = vmatmul.f32.gmra.mxu0 %v146
    %v275 = vpop.f32.mrf.mxu0
    %v276 = vadd.f32 %v211, %v275
    %277 = vmatmul.f32.gmra.mxu0 %v149
    %v278 = vpop.f32.mrf.mxu0
    %v279 = vadd.f32 %v214, %v278
    %280 = vmatmul.f32.gmra.mxu0 %v152
    %v281 = vpop.f32.mrf.mxu0
    %v282 = vadd.f32 %v217, %v281
    %283 = vmatmul.f32.gmra.mxu0 %v155
    %v284 = vpop.f32.mrf.mxu0
    %v285 = vadd.f32 %v220, %v284
    %286 = vdwg.mxu0
    %v287 = vmax.f32 %v240, 0.0
    %v288 = vmax.f32 %v243, 0.0
    %v289 = vmax.f32 %v246, 0.0
    %v290 = vmax.f32 %v249, 0.0
    %v291 = vmax.f32 %v252, 0.0
    %v292 = vmax.f32 %v255, 0.0
    %v293 = vmax.f32 %v258, 0.0
    %v294 = vmax.f32 %v261, 0.0
    %v295 = vmax.f32 %v264, 0.0
    %v296 = vmax.f32 %v267, 0.0
    %v297 = vmax.f32 %v270, 0.0
    %v298 = vmax.f32 %v273, 0.0
    %v299 = vmax.f32 %v276, 0.0
    %v300 = vmax.f32 %v279, 0.0
    %v301 = vmax.f32 %v282, 0.0
    %v302 = vmax.f32 %v285, 0.0
    %v303 = vld [vmem:[#allocation2 + $0x100] sm:$0xff]
    %v304 = vld [vmem:[#allocation2 + $0x108] sm:$0xff]
    %v305 = vld [vmem:[#allocation2 + $0x110] sm:$0xff]
    %v306 = vld [vmem:[#allocation2 + $0x118] sm:$0xff]
    %v307 = vld [vmem:[#allocation2 + $0x120] sm:$0xff]
    %v308 = vld [vmem:[#allocation2 + $0x128] sm:$0xff]
    %v309 = vld [vmem:[#allocation2 + $0x130] sm:$0xff]
    %v310 = vld [vmem:[#allocation2 + $0x138] sm:$0xff]
    %v311 = vld [vmem:[#allocation2 + $0x140] sm:$0xff]
    %v312 = vld [vmem:[#allocation2 + $0x148] sm:$0xff]
    %v313 = vld [vmem:[#allocation2 + $0x150] sm:$0xff]
    %v314 = vld [vmem:[#allocation2 + $0x158] sm:$0xff]
    %v315 = vld [vmem:[#allocation2 + $0x160] sm:$0xff]
    %v316 = vld [vmem:[#allocation2 + $0x168] sm:$0xff]
    %v317 = vld [vmem:[#allocation2 + $0x170] sm:$0xff]
    %v318 = vld [vmem:[#allocation2 + $0x178] sm:$0xff]
    %v319 = vld [vmem:[#allocation2 + $0x180] sm:$0xff]
    %v320 = vld [vmem:[#allocation2 + $0x188] sm:$0xff]
    %v321 = vld [vmem:[#allocation2 + $0x190] sm:$0xff]
    %v322 = vld [vmem:[#allocation2 + $0x198] sm:$0xff]
    %v323 = vld [vmem:[#allocation2 + $0x1a0] sm:$0xff]
    %v324 = vld [vmem:[#allocation2 + $0x1a8] sm:$0xff]
    %v325 = vld [vmem:[#allocation2 + $0x1b0] sm:$0xff]
    %v326 = vld [vmem:[#allocation2 + $0x1b8] sm:$0xff]
    %v327 = vld [vmem:[#allocation2 + $0x1c0] sm:$0xff]
    %v328 = vld [vmem:[#allocation2 + $0x1c8] sm:$0xff]
    %v329 = vld [vmem:[#allocation2 + $0x1d0] sm:$0xff]
    %v330 = vld [vmem:[#allocation2 + $0x1d8] sm:$0xff]
    %v331 = vld [vmem:[#allocation2 + $0x1e0] sm:$0xff]
    %v332 = vld [vmem:[#allocation2 + $0x1e8] sm:$0xff]
    %v333 = vld [vmem:[#allocation2 + $0x1f0] sm:$0xff]
    %v334 = vld [vmem:[#allocation2 + $0x1f8] sm:$0xff]
    %335 = vmatpush.msra.mxu0 %v302
    %336 = vmatpush.msra.mxu0 %v301
    %337 = vmatpush.msra.mxu0 %v300
    %338 = vmatpush.msra.mxu0 %v299
    %339 = vmatpush.msra.mxu0 %v298
    %340 = vmatpush.msra.mxu0 %v297
    %341 = vmatpush.msra.mxu0 %v296
    %342 = vmatpush.msra.mxu0 %v295
    %343 = vmatpush.msra.mxu0 %v294
    %344 = vmatpush.msra.mxu0 %v293
    %345 = vmatpush.msra.mxu0 %v292
    %346 = vmatpush.msra.mxu0 %v291
    %347 = vmatpush.msra.mxu0 %v290
    %348 = vmatpush.msra.mxu0 %v289
    %349 = vmatpush.msra.mxu0 %v288
    %350 = vmatpush.msra.mxu0 %v287
    %351 = vmatmul.f32.gmra.mxu0 %v27
    %v352 = vpop.f32.mrf.mxu0
    %v353 = vadd.f32 0.0, %v352
    %354 = vmatmul.f32.gmra.mxu0 %v28
    %v355 = vpop.f32.mrf.mxu0
    %v356 = vadd.f32 0.0, %v355
    %357 = vmatmul.f32.gmra.mxu0 %v29
    %v358 = vpop.f32.mrf.mxu0
    %v359 = vadd.f32 0.0, %v358
    %360 = vmatmul.f32.gmra.mxu0 %v30
    %v361 = vpop.f32.mrf.mxu0
    %v362 = vadd.f32 0.0, %v361
    %363 = vmatmul.f32.gmra.mxu0 %v31
    %v364 = vpop.f32.mrf.mxu0
    %v365 = vadd.f32 0.0, %v364
    %366 = vmatmul.f32.gmra.mxu0 %v32
    %v367 = vpop.f32.mrf.mxu0
    %v368 = vadd.f32 0.0, %v367
    %369 = vmatmul.f32.gmra.mxu0 %v33
    %v370 = vpop.f32.mrf.mxu0
    %v371 = vadd.f32 0.0, %v370
    %372 = vmatmul.f32.gmra.mxu0 %v34
    %v373 = vpop.f32.mrf.mxu0
    %v374 = vadd.f32 0.0, %v373
    %375 = vmatmul.f32.gmra.mxu0 %v35
    %v376 = vpop.f32.mrf.mxu0
    %v377 = vadd.f32 0.0, %v376
    %378 = vmatmul.f32.gmra.mxu0 %v36
    %v379 = vpop.f32.mrf.mxu0
    %v380 = vadd.f32 0.0, %v379
    %381 = vmatmul.f32.gmra.mxu0 %v37
    %v382 = vpop.f32.mrf.mxu0
    %v383 = vadd.f32 0.0, %v382
    %384 = vmatmul.f32.gmra.mxu0 %v38
    %v385 = vpop.f32.mrf.mxu0
    %v386 = vadd.f32 0.0, %v385
    %387 = vmatmul.f32.gmra.mxu0 %v39
    %v388 = vpop.f32.mrf.mxu0
    %v389 = vadd.f32 0.0, %v388
    %390 = vmatmul.f32.gmra.mxu0 %v40
    %v391 = vpop.f32.mrf.mxu0
    %v392 = vadd.f32 0.0, %v391
    %393 = vmatmul.f32.gmra.mxu0 %v41
    %v394 = vpop.f32.mrf.mxu0
    %v395 = vadd.f32 0.0, %v394
    %396 = vmatmul.f32.gmra.mxu0 %v42
    %v397 = vpop.f32.mrf.mxu0
    %v398 = vadd.f32 0.0, %v397
    %399 = vdwg.mxu0
    %400 = vmatpush.msra.mxu0 %v334
    %401 = vmatpush.msra.mxu0 %v333
    %402 = vmatpush.msra.mxu0 %v332
    %403 = vmatpush.msra.mxu0 %v331
    %404 = vmatpush.msra.mxu0 %v330
    %405 = vmatpush.msra.mxu0 %v329
    %406 = vmatpush.msra.mxu0 %v328
    %407 = vmatpush.msra.mxu0 %v327
    %408 = vmatpush.msra.mxu0 %v326
    %409 = vmatpush.msra.mxu0 %v325
    %410 = vmatpush.msra.mxu0 %v324
    %411 = vmatpush.msra.mxu0 %v323
    %412 = vmatpush.msra.mxu0 %v322
    %413 = vmatpush.msra.mxu0 %v321
    %414 = vmatpush.msra.mxu0 %v320
    %415 = vmatpush.msra.mxu0 %v319
    %416 = vmatmul.f32.gmra.mxu0 %v287
    %v417 = vpop.f32.mrf.mxu0
    %v418 = vadd.f32 0.0, %v417
    %419 = vmatmul.f32.gmra.mxu0 %v288
    %v420 = vpop.f32.mrf.mxu0
    %v421 = vadd.f32 0.0, %v420
    %422 = vmatmul.f32.gmra.mxu0 %v289
    %v423 = vpop.f32.mrf.mxu0
    %v424 = vadd.f32 0.0, %v423
    %425 = vmatmul.f32.gmra.mxu0 %v290
    %v426 = vpop.f32.mrf.mxu0
    %v427 = vadd.f32 0.0, %v426
    %428 = vmatmul.f32.gmra.mxu0 %v291
    %v429 = vpop.f32.mrf.mxu0
    %v430 = vadd.f32 0.0, %v429
    %431 = vmatmul.f32.gmra.mxu0 %v292
    %v432 = vpop.f32.mrf.mxu0
    %v433 = vadd.f32 0.0, %v432
    %434 = vmatmul.f32.gmra.mxu0 %v293
    %v435 = vpop.f32.mrf.mxu0
    %v436 = vadd.f32 0.0, %v435
    %437 = vmatmul.f32.gmra.mxu0 %v294
    %v438 = vpop.f32.mrf.mxu0
    %v439 = vadd.f32 0.0, %v438
    %440 = vmatmul.f32.gmra.mxu0 %v295
    %v441 = vpop.f32.mrf.mxu0
    %v442 = vadd.f32 0.0, %v441
    %443 = vmatmul.f32.gmra.mxu0 %v296
    %v444 = vpop.f32.mrf.mxu0
    %v445 = vadd.f32 0.0, %v444
    %446 = vmatmul.f32.gmra.mxu0 %v297
    %v447 = vpop.f32.mrf.mxu0
    %v448 = vadd.f32 0.0, %v447
    %449 = vmatmul.f32.gmra.mxu0 %v298
    %v450 = vpop.f32.mrf.mxu0
    %v451 = vadd.f32 0.0, %v450
    %452 = vmatmul.f32.gmra.mxu0 %v299
    %v453 = vpop.f32.mrf.mxu0
    %v454 = vadd.f32 0.0, %v453
    %455 = vmatmul.f32.gmra.mxu0 %v300
    %v456 = vpop.f32.mrf.mxu0
    %v457 = vadd.f32 0.0, %v456
    %458 = vmatmul.f32.gmra.mxu0 %v301
    %v459 = vpop.f32.mrf.mxu0
    %v460 = vadd.f32 0.0, %v459
    %461 = vmatmul.f32.gmra.mxu0 %v302
    %v462 = vpop.f32.mrf.mxu0
    %v463 = vadd.f32 0.0, %v462
    %464 = vdwg.mxu0
    %465 = vmatpush.msra.mxu0 %v318
    %466 = vmatpush.msra.mxu0 %v317
    %467 = vmatpush.msra.mxu0 %v316
    %468 = vmatpush.msra.mxu0 %v315
    %469 = vmatpush.msra.mxu0 %v314
    %470 = vmatpush.msra.mxu0 %v313
    %471 = vmatpush.msra.mxu0 %v312
    %472 = vmatpush.msra.mxu0 %v311
    %473 = vmatpush.msra.mxu0 %v310
    %474 = vmatpush.msra.mxu0 %v309
    %475 = vmatpush.msra.mxu0 %v308
    %476 = vmatpush.msra.mxu0 %v307
    %477 = vmatpush.msra.mxu0 %v306
    %478 = vmatpush.msra.mxu0 %v305
    %479 = vmatpush.msra.mxu0 %v304
    %480 = vmatpush.msra.mxu0 %v303
    %481 = vmatmul.f32.gmra.mxu0 %v353
    %v482 = vpop.f32.mrf.mxu0
    %v483 = vadd.f32 %v418, %v482
    %484 = vmatmul.f32.gmra.mxu0 %v356
    %v485 = vpop.f32.mrf.mxu0
    %v486 = vadd.f32 %v421, %v485
    %487 = vmatmul.f32.gmra.mxu0 %v359
    %v488 = vpop.f32.mrf.mxu0
    %v489 = vadd.f32 %v424, %v488
    %490 = vmatmul.f32.gmra.mxu0 %v362
    %v491 = vpop.f32.mrf.mxu0
    %v492 = vadd.f32 %v427, %v491
    %493 = vmatmul.f32.gmra.mxu0 %v365
    %v494 = vpop.f32.mrf.mxu0
    %v495 = vadd.f32 %v430, %v494
    %496 = vmatmul.f32.gmra.mxu0 %v368
    %v497 = vpop.f32.mrf.mxu0
    %v498 = vadd.f32 %v433, %v497
    %499 = vmatmul.f32.gmra.mxu0 %v371
    %v500 = vpop.f32.mrf.mxu0
    %v501 = vadd.f32 %v436, %v500
    %502 = vmatmul.f32.gmra.mxu0 %v374
    %v503 = vpop.f32.mrf.mxu0
    %v504 = vadd.f32 %v439, %v503
    %505 = vmatmul.f32.gmra.mxu0 %v377
    %v506 = vpop.f32.mrf.mxu0
    %v507 = vadd.f32 %v442, %v506
    %508 = vmatmul.f32.gmra.mxu0 %v380
    %v509 = vpop.f32.mrf.mxu0
    %v510 = vadd.f32 %v445, %v509
    %511 = vmatmul.f32.gmra.mxu0 %v383
    %v512 = vpop.f32.mrf.mxu0
    %v513 = vadd.f32 %v448, %v512
    %514 = vmatmul.f32.gmra.mxu0 %v386
    %v515 = vpop.f32.mrf.mxu0
    %v516 = vadd.f32 %v451, %v515
    %517 = vmatmul.f32.gmra.mxu0 %v389
    %v518 = vpop.f32.mrf.mxu0
    %v519 = vadd.f32 %v454, %v518
    %520 = vmatmul.f32.gmra.mxu0 %v392
    %v521 = vpop.f32.mrf.mxu0
    %v522 = vadd.f32 %v457, %v521
    %523 = vmatmul.f32.gmra.mxu0 %v395
    %v524 = vpop.f32.mrf.mxu0
    %v525 = vadd.f32 %v460, %v524
    %526 = vmatmul.f32.gmra.mxu0 %v398
    %v527 = vpop.f32.mrf.mxu0
    %v528 = vadd.f32 %v463, %v527
    %529 = vdwg.mxu0
    %v530 = vmax.f32 %v483, 0.0
    %v531 = vmax.f32 %v486, 0.0
    %v532 = vmax.f32 %v489, 0.0
    %v533 = vmax.f32 %v492, 0.0
    %v534 = vmax.f32 %v495, 0.0
    %v535 = vmax.f32 %v498, 0.0
    %v536 = vmax.f32 %v501, 0.0
    %v537 = vmax.f32 %v504, 0.0
    %v538 = vmax.f32 %v507, 0.0
    %v539 = vmax.f32 %v510, 0.0
    %v540 = vmax.f32 %v513, 0.0
    %v541 = vmax.f32 %v516, 0.0
    %v542 = vmax.f32 %v519, 0.0
    %v543 = vmax.f32 %v522, 0.0
    %v544 = vmax.f32 %v525, 0.0
    %v545 = vmax.f32 %v528, 0.0
    %v546 = vld [vmem:[#allocation2 + $0x200] sm:$0xff]
    %v547 = vld [vmem:[#allocation2 + $0x208] sm:$0xff]
    %v548 = vld [vmem:[#allocation2 + $0x210] sm:$0xff]
    %v549 = vld [vmem:[#allocation2 + $0x218] sm:$0xff]
    %v550 = vld [vmem:[#allocation2 + $0x220] sm:$0xff]
    %v551 = vld [vmem:[#allocation2 + $0x228] sm:$0xff]
    %v552 = vld [vmem:[#allocation2 + $0x230] sm:$0xff]
    %v553 = vld [vmem:[#allocation2 + $0x238] sm:$0xff]
    %v554 = vld [vmem:[#allocation2 + $0x240] sm:$0xff]
    %v555 = vld [vmem:[#allocation2 + $0x248] sm:$0xff]
    %v556 = vld [vmem:[#allocation2 + $0x250] sm:$0xff]
    %v557 = vld [vmem:[#allocation2 + $0x258] sm:$0xff]
    %v558 = vld [vmem:[#allocation2 + $0x260] sm:$0xff]
    %v559 = vld [vmem:[#allocation2 + $0x268] sm:$0xff]
    %v560 = vld [vmem:[#allocation2 + $0x270] sm:$0xff]
    %v561 = vld [vmem:[#allocation2 + $0x278] sm:$0xff]
    %v562 = vld [vmem:[#allocation2 + $0x280] sm:$0xff]
    %v563 = vld [vmem:[#allocation2 + $0x288] sm:$0xff]
    %v564 = vld [vmem:[#allocation2 + $0x290] sm:$0xff]
    %v565 = vld [vmem:[#allocation2 + $0x298] sm:$0xff]
    %v566 = vld [vmem:[#allocation2 + $0x2a0] sm:$0xff]
    %v567 = vld [vmem:[#allocation2 + $0x2a8] sm:$0xff]
    %v568 = vld [vmem:[#allocation2 + $0x2b0] sm:$0xff]
    %v569 = vld [vmem:[#allocation2 + $0x2b8] sm:$0xff]
    %v570 = vld [vmem:[#allocation2 + $0x2c0] sm:$0xff]
    %v571 = vld [vmem:[#allocation2 + $0x2c8] sm:$0xff]
    %v572 = vld [vmem:[#allocation2 + $0x2d0] sm:$0xff]
    %v573 = vld [vmem:[#allocation2 + $0x2d8] sm:$0xff]
    %v574 = vld [vmem:[#allocation2 + $0x2e0] sm:$0xff]
    %v575 = vld [vmem:[#allocation2 + $0x2e8] sm:$0xff]
    %v576 = vld [vmem:[#allocation2 + $0x2f0] sm:$0xff]
    %v577 = vld [vmem:[#allocation2 + $0x2f8] sm:$0xff]
    %578 = vmatpush.msra.mxu0 %v545
    %579 = vmatpush.msra.mxu0 %v544
    %580 = vmatpush.msra.mxu0 %v543
    %581 = vmatpush.msra.mxu0 %v542
    %582 = vmatpush.msra.mxu0 %v541
    %583 = vmatpush.msra.mxu0 %v540
    %584 = vmatpush.msra.mxu0 %v539
    %585 = vmatpush.msra.mxu0 %v538
    %586 = vmatpush.msra.mxu0 %v537
    %587 = vmatpush.msra.mxu0 %v536
    %588 = vmatpush.msra.mxu0 %v535
    %589 = vmatpush.msra.mxu0 %v534
    %590 = vmatpush.msra.mxu0 %v533
    %591 = vmatpush.msra.mxu0 %v532
    %592 = vmatpush.msra.mxu0 %v531
    %593 = vmatpush.msra.mxu0 %v530
    %594 = vmatmul.f32.gmra.mxu0 %v27
    %v595 = vpop.f32.mrf.mxu0
    %v596 = vadd.f32 0.0, %v595
    %597 = vmatmul.f32.gmra.mxu0 %v28
    %v598 = vpop.f32.mrf.mxu0
    %v599 = vadd.f32 0.0, %v598
    %600 = vmatmul.f32.gmra.mxu0 %v29
    %v601 = vpop.f32.mrf.mxu0
    %v602 = vadd.f32 0.0, %v601
    %603 = vmatmul.f32.gmra.mxu0 %v30
    %v604 = vpop.f32.mrf.mxu0
    %v605 = vadd.f32 0.0, %v604
    %606 = vmatmul.f32.gmra.mxu0 %v31
    %v607 = vpop.f32.mrf.mxu0
    %v608 = vadd.f32 0.0, %v607
    %609 = vmatmul.f32.gmra.mxu0 %v32
    %v610 = vpop.f32.mrf.mxu0
    %v611 = vadd.f32 0.0, %v610
    %612 = vmatmul.f32.gmra.mxu0 %v33
    %v613 = vpop.f32.mrf.mxu0
    %v614 = vadd.f32 0.0, %v613
    %615 = vmatmul.f32.gmra.mxu0 %v34
    %v616 = vpop.f32.mrf.mxu0
    %v617 = vadd.f32 0.0, %v616
    %618 = vmatmul.f32.gmra.mxu0 %v35
    %v619 = vpop.f32.mrf.mxu0
    %v620 = vadd.f32 0.0, %v619
    %621 = vmatmul.f32.gmra.mxu0 %v36
    %v622 = vpop.f32.mrf.mxu0
    %v623 = vadd.f32 0.0, %v622
    %624 = vmatmul.f32.gmra.mxu0 %v37
    %v625 = vpop.f32.mrf.mxu0
    %v626 = vadd.f32 0.0, %v625
    %627 = vmatmul.f32.gmra.mxu0 %v38
    %v628 = vpop.f32.mrf.mxu0
    %v629 = vadd.f32 0.0, %v628
    %630 = vmatmul.f32.gmra.mxu0 %v39
    %v631 = vpop.f32.mrf.mxu0
    %v632 = vadd.f32 0.0, %v631
    %633 = vmatmul.f32.gmra.mxu0 %v40
    %v634 = vpop.f32.mrf.mxu0
    %v635 = vadd.f32 0.0, %v634
    %636 = vmatmul.f32.gmra.mxu0 %v41
    %v637 = vpop.f32.mrf.mxu0
    %v638 = vadd.f32 0.0, %v637
    %639 = vmatmul.f32.gmra.mxu0 %v42
    %v640 = vpop.f32.mrf.mxu0
    %v641 = vadd.f32 0.0, %v640
    %642 = vdwg.mxu0
    %643 = vmatpush.msra.mxu0 %v577
    %644 = vmatpush.msra.mxu0 %v576
    %645 = vmatpush.msra.mxu0 %v575
    %646 = vmatpush.msra.mxu0 %v574
    %647 = vmatpush.msra.mxu0 %v573
    %648 = vmatpush.msra.mxu0 %v572
    %649 = vmatpush.msra.mxu0 %v571
    %650 = vmatpush.msra.mxu0 %v570
    %651 = vmatpush.msra.mxu0 %v569
    %652 = vmatpush.msra.mxu0 %v568
    %653 = vmatpush.msra.mxu0 %v567
    %654 = vmatpush.msra.mxu0 %v566
    %655 = vmatpush.msra.mxu0 %v565
    %656 = vmatpush.msra.mxu0 %v564
    %657 = vmatpush.msra.mxu0 %v563
    %658 = vmatpush.msra.mxu0 %v562
    %659 = vmatmul.f32.gmra.mxu0 %v530
    %v660 = vpop.f32.mrf.mxu0
    %v661 = vadd.f32 0.0, %v660
    %662 = vmatmul.f32.gmra.mxu0 %v531
    %v663 = vpop.f32.mrf.mxu0
    %v664 = vadd.f32 0.0, %v663
    %665 = vmatmul.f32.gmra.mxu0 %v532
    %v666 = vpop.f32.mrf.mxu0
    %v667 = vadd.f32 0.0, %v666
    %668 = vmatmul.f32.gmra.mxu0 %v533
    %v669 = vpop.f32.mrf.mxu0
    %v670 = vadd.f32 0.0, %v669
    %671 = vmatmul.f32.gmra.mxu0 %v534
    %v672 = vpop.f32.mrf.mxu0
    %v673 = vadd.f32 0.0, %v672
    %674 = vmatmul.f32.gmra.mxu0 %v535
    %v675 = vpop.f32.mrf.mxu0
    %v676 = vadd.f32 0.0, %v675
    %677 = vmatmul.f32.gmra.mxu0 %v536
    %v678 = vpop.f32.mrf.mxu0
    %v679 = vadd.f32 0.0, %v678
    %680 = vmatmul.f32.gmra.mxu0 %v537
    %v681 = vpop.f32.mrf.mxu0
    %v682 = vadd.f32 0.0, %v681
    %683 = vmatmul.f32.gmra.mxu0 %v538
    %v684 = vpop.f32.mrf.mxu0
    %v685 = vadd.f32 0.0, %v684
    %686 = vmatmul.f32.gmra.mxu0 %v539
    %v687 = vpop.f32.mrf.mxu0
    %v688 = vadd.f32 0.0, %v687
    %689 = vmatmul.f32.gmra.mxu0 %v540
    %v690 = vpop.f32.mrf.mxu0
    %v691 = vadd.f32 0.0, %v690
    %692 = vmatmul.f32.gmra.mxu0 %v541
    %v693 = vpop.f32.mrf.mxu0
    %v694 = vadd.f32 0.0, %v693
    %695 = vmatmul.f32.gmra.mxu0 %v542
    %v696 = vpop.f32.mrf.mxu0
    %v697 = vadd.f32 0.0, %v696
    %698 = vmatmul.f32.gmra.mxu0 %v543
    %v699 = vpop.f32.mrf.mxu0
    %v700 = vadd.f32 0.0, %v699
    %701 = vmatmul.f32.gmra.mxu0 %v544
    %v702 = vpop.f32.mrf.mxu0
    %v703 = vadd.f32 0.0, %v702
    %704 = vmatmul.f32.gmra.mxu0 %v545
    %v705 = vpop.f32.mrf.mxu0
    %v706 = vadd.f32 0.0, %v705
    %707 = vdwg.mxu0
    %708 = vmatpush.msra.mxu0 %v561
    %709 = vmatpush.msra.mxu0 %v560
    %710 = vmatpush.msra.mxu0 %v559
    %711 = vmatpush.msra.mxu0 %v558
    %712 = vmatpush.msra.mxu0 %v557
    %713 = vmatpush.msra.mxu0 %v556
    %714 = vmatpush.msra.mxu0 %v555
    %715 = vmatpush.msra.mxu0 %v554
    %716 = vmatpush.msra.mxu0 %v553
    %717 = vmatpush.msra.mxu0 %v552
    %718 = vmatpush.msra.mxu0 %v551
    %719 = vmatpush.msra.mxu0 %v550
    %720 = vmatpush.msra.mxu0 %v549
    %721 = vmatpush.msra.mxu0 %v548
    %722 = vmatpush.msra.mxu0 %v547
    %723 = vmatpush.msra.mxu0 %v546
    %724 = vmatmul.f32.gmra.mxu0 %v596
    %v725 = vpop.f32.mrf.mxu0
    %v726 = vadd.f32 %v661, %v725
    %727 = vmatmul.f32.gmra.mxu0 %v599
    %v728 = vpop.f32.mrf.mxu0
    %v729 = vadd.f32 %v664, %v728
    %730 = vmatmul.f32.gmra.mxu0 %v602
    %v731 = vpop.f32.mrf.mxu0
    %v732 = vadd.f32 %v667, %v731
    %733 = vmatmul.f32.gmra.mxu0 %v605
    %v734 = vpop.f32.mrf.mxu0
    %v735 = vadd.f32 %v670, %v734
    %736 = vmatmul.f32.gmra.mxu0 %v608
    %v737 = vpop.f32.mrf.mxu0
    %v738 = vadd.f32 %v673, %v737
    %739 = vmatmul.f32.gmra.mxu0 %v611
    %v740 = vpop.f32.mrf.mxu0
    %v741 = vadd.f32 %v676, %v740
    %742 = vmatmul.f32.gmra.mxu0 %v614
    %v743 = vpop.f32.mrf.mxu0
    %v744 = vadd.f32 %v679, %v743
    %745 = vmatmul.f32.gmra.mxu0 %v617
    %v746 = vpop.f32.mrf.mxu0
    %v747 = vadd.f32 %v682, %v746
    %748 = vmatmul.f32.gmra.mxu0 %v620
    %v749 = vpop.f32.mrf.mxu0
    %v750 = vadd.f32 %v685, %v749
    %751 = vmatmul.f32.gmra.mxu0 %v623
    %v752 = vpop.f32.mrf.mxu0
    %v753 = vadd.f32 %v688, %v752
    %754 = vmatmul.f32.gmra.mxu0 %v626
    %v755 = vpop.f32.mrf.mxu0
    %v756 = vadd.f32 %v691, %v755
    %757 = vmatmul.f32.gmra.mxu0 %v629
    %v758 = vpop.f32.mrf.mxu0
    %v759 = vadd.f32 %v694, %v758
    %760 = vmatmul.f32.gmra.mxu0 %v632
    %v761 = vpop.f32.mrf.mxu0
    %v762 = vadd.f32 %v697, %v761
    %763 = vmatmul.f32.gmra.mxu0 %v635
    %v764 = vpop.f32.mrf.mxu0
    %v765 = vadd.f32 %v700, %v764
    %766 = vmatmul.f32.gmra.mxu0 %v638
    %v767 = vpop.f32.mrf.mxu0
    %v768 = vadd.f32 %v703, %v767
    %769 = vmatmul.f32.gmra.mxu0 %v641
    %v770 = vpop.f32.mrf.mxu0
    %v771 = vadd.f32 %v706, %v770
    %772 = vdwg.mxu0
    %v773 = vmax.f32 %v726, 0.0
    %v774 = vmax.f32 %v729, 0.0
    %v775 = vmax.f32 %v732, 0.0
    %v776 = vmax.f32 %v735, 0.0
    %v777 = vmax.f32 %v738, 0.0
    %v778 = vmax.f32 %v741, 0.0
    %v779 = vmax.f32 %v744, 0.0
    %v780 = vmax.f32 %v747, 0.0
    %v781 = vmax.f32 %v750, 0.0
    %v782 = vmax.f32 %v753, 0.0
    %v783 = vmax.f32 %v756, 0.0
    %v784 = vmax.f32 %v759, 0.0
    %v785 = vmax.f32 %v762, 0.0
    %v786 = vmax.f32 %v765, 0.0
    %v787 = vmax.f32 %v768, 0.0
    %v788 = vmax.f32 %v771, 0.0
    %789 = vmatpush.msra.mxu0 %v788
    %790 = vmatpush.msra.mxu0 %v787
    %791 = vmatpush.msra.mxu0 %v786
    %792 = vmatpush.msra.mxu0 %v785
    %793 = vmatpush.msra.mxu0 %v784
    %794 = vmatpush.msra.mxu0 %v783
    %795 = vmatpush.msra.mxu0 %v782
    %796 = vmatpush.msra.mxu0 %v781
    %797 = vmatpush.msra.mxu0 %v780
    %798 = vmatpush.msra.mxu0 %v779
    %799 = vmatpush.msra.mxu0 %v778
    %800 = vmatpush.msra.mxu0 %v777
    %801 = vmatpush.msra.mxu0 %v776
    %802 = vmatpush.msra.mxu0 %v775
    %803 = vmatpush.msra.mxu0 %v774
    %804 = vmatpush.msra.mxu0 %v773
    %805 = vmatmul.f32.gmra.mxu0 %v43
    %v806 = vpop.f32.mrf.mxu0
    %v807 = vadd.f32 0.0, %v806
    %808 = vdwg.mxu0
    %v809 = vlaneseq
    %v810 = vand.u32 %v809, 127
    %vm811 = vcmp.eq.s32.totalorder %v810, 127
    %v812 = vsel %vm811, 1.0, %v807
    %v813 = vld [vmem:[#allocation2 + $0x300] sm:$0xff]
    %v814 = vld [vmem:[#allocation2 + $0x308] sm:$0xff]
    %v815 = vld [vmem:[#allocation2 + $0x310] sm:$0xff]
    %v816 = vld [vmem:[#allocation2 + $0x318] sm:$0xff]
    %v817 = vld [vmem:[#allocation2 + $0x320] sm:$0xff]
    %v818 = vld [vmem:[#allocation2 + $0x328] sm:$0xff]
    %v819 = vld [vmem:[#allocation2 + $0x330] sm:$0xff]
    %v820 = vld [vmem:[#allocation2 + $0x338] sm:$0xff]
    %v821 = vld [vmem:[#allocation2 + $0x340] sm:$0xff]
    %v822 = vld [vmem:[#allocation2 + $0x348] sm:$0xff]
    %v823 = vld [vmem:[#allocation2 + $0x350] sm:$0xff]
    %v824 = vld [vmem:[#allocation2 + $0x358] sm:$0xff]
    %v825 = vld [vmem:[#allocation2 + $0x360] sm:$0xff]
    %v826 = vld [vmem:[#allocation2 + $0x368] sm:$0xff]
    %v827 = vld [vmem:[#allocation2 + $0x370] sm:$0xff]
    %v828 = vld [vmem:[#allocation2 + $0x378] sm:$0xff]
    %v829 = vld [vmem:[#allocation2 + $0x380] sm:$0xff]
    %v830 = vld [vmem:[#allocation2 + $0x388] sm:$0xff]
    %v831 = vld [vmem:[#allocation2 + $0x390] sm:$0xff]
    %v832 = vld [vmem:[#allocation2 + $0x398] sm:$0xff]
    %v833 = vld [vmem:[#allocation2 + $0x3a0] sm:$0xff]
    %v834 = vld [vmem:[#allocation2 + $0x3a8] sm:$0xff]
    %v835 = vld [vmem:[#allocation2 + $0x3b0] sm:$0xff]
    %v836 = vld [vmem:[#allocation2 + $0x3b8] sm:$0xff]
    %v837 = vld [vmem:[#allocation2 + $0x3c0] sm:$0xff]
    %v838 = vld [vmem:[#allocation2 + $0x3c8] sm:$0xff]
    %v839 = vld [vmem:[#allocation2 + $0x3d0] sm:$0xff]
    %v840 = vld [vmem:[#allocation2 + $0x3d8] sm:$0xff]
    %v841 = vld [vmem:[#allocation2 + $0x3e0] sm:$0xff]
    %v842 = vld [vmem:[#allocation2 + $0x3e8] sm:$0xff]
    %v843 = vld [vmem:[#allocation2 + $0x3f0] sm:$0xff]
    %v844 = vld [vmem:[#allocation2 + $0x3f8] sm:$0xff]
    %845 = vmatpush.msra.mxu0 %v828
    %846 = vmatpush.msra.mxu0 %v827
    %847 = vmatpush.msra.mxu0 %v826
    %848 = vmatpush.msra.mxu0 %v825
    %849 = vmatpush.msra.mxu0 %v824
    %850 = vmatpush.msra.mxu0 %v823
    %851 = vmatpush.msra.mxu0 %v822
    %852 = vmatpush.msra.mxu0 %v821
    %853 = vmatpush.msra.mxu0 %v820
    %854 = vmatpush.msra.mxu0 %v819
    %855 = vmatpush.msra.mxu0 %v818
    %856 = vmatpush.msra.mxu0 %v817
    %857 = vmatpush.msra.mxu0 %v816
    %858 = vmatpush.msra.mxu0 %v815
    %859 = vmatpush.msra.mxu0 %v814
    %860 = vmatpush.msra.mxu0 %v813
    %861 = vmatmul.f32.gmra.mxu0 %v812
    %v862 = vpop.f32.mrf.mxu0
    %v863 = vadd.f32 0.0, %v862
    %864 = vdwg.mxu0
    %v865 = vmax.f32 %v863, 0.0
    %866 = vmatpush.msra.mxu0 %v844
    %867 = vmatpush.msra.mxu0 %v843
    %868 = vmatpush.msra.mxu0 %v842
    %869 = vmatpush.msra.mxu0 %v841
    %870 = vmatpush.msra.mxu0 %v840
    %871 = vmatpush.msra.mxu0 %v839
    %872 = vmatpush.msra.mxu0 %v838
    %873 = vmatpush.msra.mxu0 %v837
    %874 = vmatpush.msra.mxu0 %v836
    %875 = vmatpush.msra.mxu0 %v835
    %876 = vmatpush.msra.mxu0 %v834
    %877 = vmatpush.msra.mxu0 %v833
    %878 = vmatpush.msra.mxu0 %v832
    %879 = vmatpush.msra.mxu0 %v831
    %880 = vmatpush.msra.mxu0 %v830
    %881 = vmatpush.msra.mxu0 %v829
    %882 = vmatmul.f32.gmra.mxu0 %v865
    %v883 = vpop.f32.mrf.mxu0
    %v884 = vadd.f32 0.0, %v883
    %885 = vdwg.mxu0
    %886 = vst [vmem:[%s2] sm:$0xff] %v884
    // Predicated region
    $region14: #{net_forward.1} parent=1 // pred_check
      _
    $region15: #{net_forward.1} parent=1 // pred_check_branch
      %888 = sbr.rel (0) target = $region17
    $region16: #{net_forward.1} parent=1 // pred_region
      _
    $region17: #{net_forward.1} parent=1 // pred_fallthru
      _
    // Predicated region
    $region18: #{net_forward.1} parent=1 // pred_check
      _
    $region19: #{net_forward.1} parent=1 // pred_check_branch
      %890 = sbr.rel (0) target = $region21
    $region20: #{net_forward.1} parent=1 // pred_region
      _
    $region21: #{net_forward.1} parent=1 // pred_fallthru
      _
    %891 = vsyncpa [#allocation3], 1

</llo_original>
